<compile_context>
chip_gen: v6e
topology: v6e:2x2x1
jax: 0.10.0
libtpu: 0.0.40
codegen_flags: <defaults>
</compile_context>

<pallas_src>
import functools

import numpy as np
import jax
import jax.numpy as jnp
from jax.experimental import pallas as pl
from jax.experimental.pallas import tpu as pltpu


def _round_up(v, m):
    return (v + m - 1) // m * m


def _cdiv(a, b):
    return -(-a // b)


def _cd_linear_kernel(sc_ref, x_ref, u_ref, w_ref, b_ref, out_ref, xm_ref, *,
                      weight_stationary):
    """One (TB, TN) output tile of: Linear(concrete_dropout(x)).

    sc_ref (SMEM, (2,) f32): [logit_p / temp, 1 / temp]
    x_ref  (TB, Din) bf16, u_ref (TB, Din) bf16 : activations, uniform noise
    w_ref  (Din, TN) bf16 : weight.T, pre-scaled by 1/(1-p) in the wrapper
    b_ref  (1, TN) f32    : bias tile
    out_ref (TB, TN) f32  : output tile
    xm_ref (VMEM, (TB, Din) bf16) : masked activations scratch
    """

    def compute_mask():
        eps = 1e-7
        u = u_ref[...].astype(jnp.float32)
        # log(u+eps) - log(1-u+eps) as one log of a ratio (fewer EUP pushes).
        noise_logit = jnp.log((u + eps) / (1.0 - u + eps))
        z = sc_ref[0] + sc_ref[1] * noise_logit
        keep_prob = jax.nn.sigmoid(-z)          # == 1 - sigmoid(z)
        # 1/(1-p) is already folded into the weight.
        xm_ref[...] = (x_ref[...].astype(jnp.float32) * keep_prob
                       ).astype(xm_ref.dtype)

    if weight_stationary:
        # grid = (n, i): the batch tile changes every inner step -> recompute
        # the (cheap) mask; the (Din, TN) weight tile stays resident.
        compute_mask()
    else:
        # grid = (i, n): the mask is identical for all output-column tiles,
        # compute it once per batch tile into the VMEM scratch.
        @pl.when(pl.program_id(1) == 0)
        def _():
            compute_mask()

    acc = jax.lax.dot_general(
        xm_ref[...], w_ref[...],
        dimension_numbers=(((1,), (0,)), ((), ())),
        preferred_element_type=jnp.float32,
    )
    out_ref[...] = acc + b_ref[...]


def concrete_dropout_linear(x, weight, bias, p_logit,
                            rng_key=None, unif_noise=None,
                            weight_regularizer=1e-6,
                            dropout_regularizer=1e-5,
                            temp=0.1):
    """Forward of ConcreteDropoutLinear wrapping a Linear layer.

    x:       (B, Din) float32
    weight:  (Dout, Din) float32 (torch.nn.Linear layout)
    bias:    (Dout,) float32
    p_logit: (1,) float32
    unif_noise: optional (B, Din) uniform-[0,1) noise (torch.rand_like(x)).
    Returns (out (B, Dout) float32, regularization scalar).
    """
    B, Din = x.shape
    Dout, Din_w = weight.shape
    assert Din_w == Din

    eps = 1e-7
    p = jax.nn.sigmoid(p_logit[0])
    logit_p = jnp.log(p + eps) - jnp.log(1.0 - p + eps)
    scalars = jnp.stack([
        (logit_p / temp).astype(jnp.float32),
        jnp.float32(1.0 / temp),
    ])
    inv_retain = 1.0 / (1.0 - p)

    if unif_noise is None:
        assert rng_key is not None, "need rng_key or explicit unif_noise"
        unif_noise = jax.random.uniform(rng_key, (B, Din), dtype=jnp.float32)

    # --- per-generation VMEM budget -----------------------------------------
    try:
        vmem_cap = int(pltpu.get_tpu_info().vmem_capacity_bytes)
    except Exception:
        vmem_cap = 64 << 20                      # conservative (v7x per-TC)
    budget = int(vmem_cap * 0.70)
    tb_max = 512 if vmem_cap >= (100 << 20) else 256   # bigger batch tiles on 128 MiB parts
    tn_max = 512

    SUB = 16                                      # bf16 sublane packing
    N128 = _round_up(Dout, 128)                   # lane-dense output columns

    # Tiles chosen to minimize last-tile padding.
    if _round_up(B, SUB) <= tb_max:
        TB = _round_up(B, SUB)
    else:
        TB = _round_up(_cdiv(B, _cdiv(B, tb_max)), SUB)
    if N128 <= tn_max:
        TN = N128
    else:
        TN = _round_up(_cdiv(N128, _cdiv(N128, tn_max)), 128)

    def est_vmem(tb, tn):
        # double-buffered inputs/outputs + bf16 mask scratch
        return (2 * (2 * tb * Din * 2 + Din * tn * 2 + tn * 4 + tb * tn * 4)
                + tb * Din * 2)

    # Shrink TN, then TB, until the blocks fit the budget (v7x safety).
    while est_vmem(TB, TN) > budget and TN > 128:
        TN = max(128, _round_up(TN // 2, 128))
    while est_vmem(TB, TN) > budget and TB > SUB:
        TB = max(SUB, _round_up(TB // 2, SUB))
    # TODO(synk): for very large Din even the minimal blocks may exceed the
    # budget; a K grid axis with an f32 accumulator scratch would bound them.

    B_pad = _round_up(B, TB)
    N_pad = _round_up(N128, TN)
    n_bt, n_nt = B_pad // TB, N_pad // TN

    # --- operand prep (all layout / dtype / scaling work hoisted to XLA) ----
    x_p = jnp.pad(x.astype(jnp.bfloat16), ((0, B_pad - B), (0, 0)))
    u_p = jnp.pad(unif_noise.astype(jnp.bfloat16), ((0, B_pad - B), (0, 0)),
                  constant_values=0.5)
    # K-major weight, pre-scaled by 1/(1-p):  (x*keep*c) @ W.T == (x*keep) @ (c*W.T)
    w_t = (weight.astype(jnp.float32).T * inv_retain).astype(jnp.bfloat16)
    w_p = jnp.pad(w_t, ((0, 0), (0, N_pad - Dout)))
    b_p = jnp.pad(bias.astype(jnp.float32), (0, N_pad - Dout)).reshape(1, N_pad)

    # --- choose the stationary operand by extra HBM traffic -----------------
    w_bytes = Din * N_pad * 2
    act_bytes = 2 * B_pad * Din * 2               # x + u (bf16)
    weight_stationary = (w_bytes * (n_bt - 1)) > (act_bytes * (n_nt - 1))

    if weight_stationary:
        grid = (n_nt, n_bt)
        x_map = lambda n, i: (i, 0)
        w_map = lambda n, i: (0, n)
        b_map = lambda n, i: (0, n)
        o_map = lambda n, i: (i, n)
        weight_reads, act_reads, mask_evals = 1, n_nt, n_nt
    else:
        grid = (n_bt, n_nt)
        x_map = lambda i, n: (i, 0)
        w_map = lambda i, n: (0, n)
        b_map = lambda i, n: (0, n)
        o_map = lambda i, n: (i, n)
        weight_reads, act_reads, mask_evals = n_bt, 1, 1

    vmem_limit = int(min(max(est_vmem(TB, TN) * 5 // 4 + (2 << 20), 24 << 20),
                         int(vmem_cap * 0.85)))

    cost = pl.CostEstimate(
        flops=2 * B_pad * Din * N_pad,
        transcendentals=2 * B_pad * Din * mask_evals,
        bytes_accessed=(act_reads * act_bytes + weight_reads * w_bytes
                        + N_pad * 4 + B_pad * N_pad * 4),
    )

    kernel = functools.partial(_cd_linear_kernel,
                               weight_stationary=weight_stationary)

    out_p = pl.pallas_call(
        kernel,
        out_shape=jax.ShapeDtypeStruct((B_pad, N_pad), jnp.float32),
        grid=grid,
        in_specs=[
            pl.BlockSpec(memory_space=pltpu.MemorySpace.SMEM),   # scalars
            pl.BlockSpec((TB, Din), x_map),                      # x (bf16)
            pl.BlockSpec((TB, Din), x_map),                      # noise (bf16)
            pl.BlockSpec((Din, TN), w_map),                      # weight.T (bf16)
            pl.BlockSpec((1, TN), b_map),                        # bias (f32)
        ],
        out_specs=pl.BlockSpec((TB, TN), o_map),
        scratch_shapes=[pltpu.VMEM((TB, Din), jnp.bfloat16)],    # x_masked
        compiler_params=pltpu.CompilerParams(
            dimension_semantics=("parallel", "arbitrary"),
            vmem_limit_bytes=vmem_limit,
        ),
        cost_estimate=cost,
    )(scalars, x_p, u_p, w_p, b_p)

    out = out_p[:B, :Dout]

    # --- regularization (scalar glue, hoisted out of the kernel) ------------
    sum_of_square = jnp.sum(weight * weight) + jnp.sum(bias * bias)
    weights_reg = weight_regularizer * sum_of_square / (1.0 - p)
    dropout_reg = p * jnp.log(p) + (1.0 - p) * jnp.log(1.0 - p)
    dropout_reg = dropout_reg * (dropout_regularizer * float(Din))  # x[0].numel()
    regularization = weights_reg + dropout_reg
    return out, regularization


def _reference(x, weight, bias, p_logit, unif, temp=0.1,
               weight_regularizer=1e-6, dropout_regularizer=1e-5):
    """Pure-JAX reference matching the PyTorch module exactly."""
    eps = 1e-7
    p = jax.nn.sigmoid(p_logit[0])
    drop_logit = (jnp.log(p + eps) - jnp.log(1.0 - p + eps)
                  + jnp.log(unif + eps) - jnp.log(1.0 - unif + eps))
    drop_prob = jax.nn.sigmoid(drop_logit / temp)
    x_m = x * (1.0 - drop_prob) / (1.0 - p)
    out = x_m @ weight.T + bias
    ssq = jnp.sum(weight ** 2) + jnp.sum(bias ** 2)
    w_reg = weight_regularizer * ssq / (1.0 - p)
    d_reg = (p * jnp.log(p) + (1.0 - p) * jnp.log(1.0 - p)) * (
        dropout_regularizer * x.shape[1])
    return out, w_reg + d_reg


if __name__ == "__main__":
    B, Din, Dout = 8, 128, 64

    key = jax.random.PRNGKey(0)
    kx, kw, kb, ku = jax.random.split(key, 4)

    x = jax.random.normal(kx, (B, Din), dtype=jnp.float32)
    weight = jax.random.normal(kw, (Dout, Din), dtype=jnp.float32) * 0.05
    bias = jax.random.normal(kb, (Dout,), dtype=jnp.float32) * 0.05

    # p_logit init: uniform(init_min_logit, init_max_logit) with min==max==0.1
    init_p = 0.1
    p_logit = jnp.array([np.log(init_p) - np.log(1.0 - init_p)], dtype=jnp.float32)

    # Explicit uniform noise == torch.rand_like(x).  The kernel streams the
    # noise in bf16, so quantize it once here and feed the same values to the
    # reference (the mask is stochastic; any uniform sample is equally valid).
    unif = jax.random.uniform(ku, (B, Din), dtype=jnp.float32)
    unif = unif.astype(jnp.bfloat16).astype(jnp.float32)

    out, reg = concrete_dropout_linear(x, weight, bias, p_logit,
                                       unif_noise=unif)
    jax.block_until_ready(out)
    jax.block_until_ready(reg)

    out_ref, reg_ref = _reference(x, weight, bias, p_logit, unif)

    assert out.shape == (B, Dout)
    assert out.dtype == jnp.float32
    assert reg.shape == ()
    # bf16 MXU operands / bf16 activation streams with f32 accumulation.
    assert np.allclose(np.asarray(out), np.asarray(out_ref), atol=3e-2, rtol=3e-2)
    assert np.allclose(float(reg), float(reg_ref), atol=1e-6, rtol=1e-5)
    print("KERNEL_OK")
</pallas_src>

<mosaic_0001>
module attributes {stable_mosaic.version = 11 : i64} {
  func.func @_cd_linear_kernel(%arg0: i32, %arg1: i32, %arg2: memref<2xf32, #tpu.memory_space<smem>>, %arg3: memref<16x128xbf16, #tpu.memory_space<vmem>>, %arg4: memref<16x128xbf16, #tpu.memory_space<vmem>>, %arg5: memref<128x128xbf16, #tpu.memory_space<vmem>>, %arg6: memref<1x128xf32, #tpu.memory_space<vmem>>, %arg7: memref<16x128xf32, #tpu.memory_space<vmem>>, %arg8: memref<16x128xbf16, #tpu.memory_space<vmem>>) attributes {dimension_semantics = [#tpu.dimension_semantics<parallel>, #tpu.dimension_semantics<arbitrary>], iteration_bounds = array<i64: 1, 1>, scalar_prefetch = 0 : i64, scratch_operands = 1 : i64, tpu.core_type = #tpu.core_type<tc>, window_params = [{transform_indices = @transform_0, window_bounds = array<i64: 2>}, {transform_indices = @transform_1, window_bounds = array<i64: 16, 128>}, {transform_indices = @transform_2, window_bounds = array<i64: 16, 128>}, {transform_indices = @transform_3, window_bounds = array<i64: 128, 128>}, {transform_indices = @transform_4, window_bounds = array<i64: 1, 128>}, {transform_indices = @transform_5, window_bounds = array<i64: 16, 128>}]} {
    %c0_i32 = arith.constant 0 : i32
    %0 = arith.cmpi eq, %arg1, %c0_i32 : i32
    %1 = arith.extui %0 : i1 to i32
    %c0_i32_0 = arith.constant 0 : i32
    %2 = arith.cmpi ne, %1, %c0_i32_0 : i32
    scf.if %2 {
      %c0_8 = arith.constant 0 : index
      %c0_9 = arith.constant 0 : index
      %10 = vector.load %arg4[%c0_8, %c0_9] : memref<16x128xbf16, #tpu.memory_space<vmem>>, vector<16x128xbf16>
      %11 = arith.extf %10 : vector<16x128xbf16> to vector<16x128xf32>
      %cst_10 = arith.constant 1.000000e-07 : f32
      %12 = vector.broadcast %cst_10 : f32 to vector<16x128xf32>
      %13 = arith.addf %11, %12 : vector<16x128xf32>
      %cst_11 = arith.constant 1.000000e+00 : f32
      %14 = vector.broadcast %cst_11 : f32 to vector<16x128xf32>
      %15 = arith.subf %14, %11 : vector<16x128xf32>
      %cst_12 = arith.constant 1.000000e-07 : f32
      %16 = vector.broadcast %cst_12 : f32 to vector<16x128xf32>
      %17 = arith.addf %15, %16 : vector<16x128xf32>
      %18 = arith.divf %13, %17 : vector<16x128xf32>
      %19 = math.log %18 : vector<16x128xf32>
      %c0_13 = arith.constant 0 : index
      %20 = memref.load %arg2[%c0_13] : memref<2xf32, #tpu.memory_space<smem>>
      %c1 = arith.constant 1 : index
      %21 = memref.load %arg2[%c1] : memref<2xf32, #tpu.memory_space<smem>>
      %22 = vector.broadcast %21 : f32 to vector<16x128xf32>
      %23 = arith.mulf %22, %19 : vector<16x128xf32>
      %24 = vector.broadcast %20 : f32 to vector<16x128xf32>
      %25 = arith.addf %24, %23 : vector<16x128xf32>
      %cst_14 = arith.constant 0.000000e+00 : f32
      %26 = vector.broadcast %cst_14 : f32 to vector<16x128xf32>
      %27 = arith.subf %26, %25 : vector<16x128xf32>
      %28 = arith.negf %27 : vector<16x128xf32>
      %29 = math.exp %28 : vector<16x128xf32>
      %cst_15 = arith.constant 1.000000e+00 : f32
      %30 = vector.broadcast %cst_15 : f32 to vector<16x128xf32>
      %31 = arith.addf %30, %29 : vector<16x128xf32>
      %32 = arith.divf %30, %31 : vector<16x128xf32>
      %c0_16 = arith.constant 0 : index
      %c0_17 = arith.constant 0 : index
      %33 = vector.load %arg3[%c0_16, %c0_17] : memref<16x128xbf16, #tpu.memory_space<vmem>>, vector<16x128xbf16>
      %34 = arith.extf %33 : vector<16x128xbf16> to vector<16x128xf32>
      %35 = arith.mulf %34, %32 : vector<16x128xf32>
      %36 = arith.truncf %35 : vector<16x128xf32> to vector<16x128xbf16>
      %c0_18 = arith.constant 0 : index
      %c0_19 = arith.constant 0 : index
      %37 = vector.load %arg8[%c0_18, %c0_19] : memref<16x128xbf16, #tpu.memory_space<vmem>>, vector<16x128xbf16>
      tpu.vector_store %arg8[%c0_18, %c0_19], %36 {strides = array<i32>} : memref<16x128xbf16, #tpu.memory_space<vmem>>, vector<16x128xbf16>,
    } else {
    }
    %c0 = arith.constant 0 : index
    %c0_1 = arith.constant 0 : index
    %3 = vector.load %arg8[%c0, %c0_1] : memref<16x128xbf16, #tpu.memory_space<vmem>>, vector<16x128xbf16>
    %c0_2 = arith.constant 0 : index
    %c0_3 = arith.constant 0 : index
    %4 = vector.load %arg5[%c0_2, %c0_3] : memref<128x128xbf16, #tpu.memory_space<vmem>>, vector<128x128xbf16>
    %cst = arith.constant dense<0.000000e+00> : vector<16x128xf32>
    %5 = tpu.matmul %3, %4, %cst {dimension_numbers = #tpu.dot_dimension_numbers<[1], [0], [0], [1], [0, 0, 1, 1], [], []>} : vector<16x128xbf16>, vector<128x128xbf16>, vector<16x128xf32> -> vector<16x128xf32>
    %c0_4 = arith.constant 0 : index
    %c0_5 = arith.constant 0 : index
    %6 = vector.load %arg6[%c0_4, %c0_5] : memref<1x128xf32, #tpu.memory_space<vmem>>, vector<1x128xf32>
    %7 = vector.broadcast %6 : vector<1x128xf32> to vector<16x128xf32>
    %8 = arith.addf %5, %7 : vector<16x128xf32>
    %c0_6 = arith.constant 0 : index
    %c0_7 = arith.constant 0 : index
    %9 = vector.load %arg7[%c0_6, %c0_7] : memref<16x128xf32, #tpu.memory_space<vmem>>, vector<16x128xf32>
    tpu.vector_store %arg7[%c0_6, %c0_7], %8 {strides = array<i32>} : memref<16x128xf32, #tpu.memory_space<vmem>>, vector<16x128xf32>,
    return
  }
  func.func @transform_0(%arg0: i32, %arg1: i32) -> i32 {
    %c0_i32 = arith.constant 0 : i32
    %c0_i32_0 = arith.constant 0 : i32
    return %c0_i32 : i32
  }
  func.func @transform_1(%arg0: i32, %arg1: i32) -> (i32, i32) {
    %c0_i32 = arith.constant 0 : i32
    %c0_i32_0 = arith.constant 0 : i32
    return %arg0, %c0_i32 : i32, i32
  }
  func.func @transform_2(%arg0: i32, %arg1: i32) -> (i32, i32) {
    %c0_i32 = arith.constant 0 : i32
    %c0_i32_0 = arith.constant 0 : i32
    return %arg0, %c0_i32 : i32, i32
  }
  func.func @transform_3(%arg0: i32, %arg1: i32) -> (i32, i32) {
    %c0_i32 = arith.constant 0 : i32
    %c0_i32_0 = arith.constant 0 : i32
    return %c0_i32, %arg1 : i32, i32
  }
  func.func @transform_4(%arg0: i32, %arg1: i32) -> (i32, i32) {
    %c0_i32 = arith.constant 0 : i32
    %c0_i32_0 = arith.constant 0 : i32
    return %c0_i32, %arg1 : i32, i32
  }
  func.func @transform_5(%arg0: i32, %arg1: i32) -> (i32, i32) {
    %c0_i32 = arith.constant 0 : i32
    return %arg0, %arg1 : i32, i32
  }
}

</mosaic_0001>

<llo_original>
// kernel: tpu_custom_call.1
$region0: #{tpu_custom_call.1}
  #allocation0 [shape = 'u32[]', space=smem, size = 0x4, offset = 0x4, fixed_abs, tag = 'smem constant byte address 0x4 - core index']
  #allocation1 [shape = 'u32[144,128]{1,0:T(1,128)}', space=vmem, size = 0x12000, scoped, tag = 'internal scratch']
  #allocation2 [shape = 'bf16[16,128]{1,0:T(8,128)(2,1)}', space=vmem, size = 0x1000, scoped, tag = 'scratch operand']
  %s0 = inlined_call_operand.hbm [shape: f32[2], index: 0, kind: input, shape index: {}]
  %s1 = inlined_call_operand.hbm [shape: bf16[16,128], index: 1, kind: input, shape index: {}]
  %s2 = inlined_call_operand.hbm [shape: bf16[16,128], index: 2, kind: input, shape index: {}]
  %s3 = inlined_call_operand.hbm [shape: bf16[128,128], index: 3, kind: input, shape index: {}]
  %s4 = inlined_call_operand.vmem [shape: f32[1,128], index: 4, kind: input, shape index: {}]
  %s5 = inlined_call_operand.hbm [shape: f32[16,128], index: 5, kind: output, shape index: {}]
  %s6 = sld [smem:[#allocation0]]
  $region50: #{tpu_custom_call.1} parent=0
    _
  %s8 = ssub.s32 1, %s6
  %s9 = scalar_select 0, %s8, %s6
  $region1: #{tpu_custom_call.1} parent=0
    #allocation3 [shape = 'u8[512]{0}', space=smem, size = 0x200, scoped, tag = 'input window, operand 0, single buffered']
    #allocation4 [shape = 's32[1]{0}', space=sflag, size = 0x4, scoped, tag = 'scoped memory for tpu_custom_call.1']
    #allocation5 [shape = 's32[1]{0}', space=sflag, size = 0x4, scoped, tag = 'scoped memory for tpu_custom_call.1']
    #allocation6 [shape = 's32[1]{0}', space=sflag, size = 0x4, scoped, tag = 'scoped memory for tpu_custom_call.1']
    #allocation7 [shape = 'u8[4096]{0}', space=vmem, size = 0x1000, scoped, tag = 'input window, operand 1, single buffered']
    #allocation8 [shape = 'u8[4096]{0}', space=vmem, size = 0x1000, scoped, tag = 'input window, operand 2, single buffered']
    #allocation9 [shape = 's32[1]{0}', space=sflag, size = 0x4, scoped, tag = 'scoped memory for tpu_custom_call.1']
    #allocation10 [shape = 'u8[32768]{0}', space=vmem, size = 0x8000, scoped, tag = 'input window, operand 3, single buffered']
    #allocation11 [shape = 'u8[8192]{0}', space=vmem, size = 0x2000, scoped, tag = 'output window, operand 0, single buffered']
    %10 = vsyncpa [#allocation6], 0
    %11 = vsyncpa [#allocation4], 0
    %12 = vsyncpa [#allocation9], 0
    %13 = vsyncpa [#allocation5], 0
    // Predicated region
    $region2: #{tpu_custom_call.1} parent=1 // pred_check
      _
    $region3: #{tpu_custom_call.1} parent=1 // pred_check_branch
      %15 = sbr.rel (0) target = $region5
    $region4: #{tpu_custom_call.1} parent=1 // pred_region
      %s17 = ssub.s32 16, 16
      %18 = vsyncadd [#allocation6], %s17
      %21 = dma.hbm_to_smem %s0, 16, [#allocation3], [#allocation6]
    $region5: #{tpu_custom_call.1} parent=1 // pred_fallthru
      _
    // Predicated region
    $region6: #{tpu_custom_call.1} parent=1 // pred_check
      _
    $region7: #{tpu_custom_call.1} parent=1 // pred_check_branch
      %23 = sbr.rel (0) target = $region9
    $region8: #{tpu_custom_call.1} parent=1 // pred_region
      %s25 = ssub.s32 128, 128
      %26 = vsyncadd [#allocation4], %s25
      %s27 = sshll.u32 [#allocation7], 4
      %s28 = int_to_ptr.vmem [resolvable:$true] %s27
      %33 = dma.hbm_to_vmem [thread:$0]  %s1, 128, %s28, [#allocation4], 64, 64, 4
    $region9: #{tpu_custom_call.1} parent=1 // pred_fallthru
      _
    // Predicated region
    $region10: #{tpu_custom_call.1} parent=1 // pred_check
      _
    $region11: #{tpu_custom_call.1} parent=1 // pred_check_branch
      %35 = sbr.rel (0) target = $region13
    $region12: #{tpu_custom_call.1} parent=1 // pred_region
      %s37 = ssub.s32 128, 128
      %38 = vsyncadd [#allocation9], %s37
      %s39 = sshll.u32 [#allocation8], 4
      %s40 = int_to_ptr.vmem [resolvable:$true] %s39
      %45 = dma.hbm_to_vmem [thread:$0]  %s2, 128, %s40, [#allocation9], 64, 64, 4
    $region13: #{tpu_custom_call.1} parent=1 // pred_fallthru
      _
    // Predicated region
    $region14: #{tpu_custom_call.1} parent=1 // pred_check
      _
    $region15: #{tpu_custom_call.1} parent=1 // pred_check_branch
      %47 = sbr.rel (0) target = $region17
    $region16: #{tpu_custom_call.1} parent=1 // pred_region
      %s49 = ssub.s32 1024, 1024
      %50 = vsyncadd [#allocation9], %s49
      %s51 = sshll.u32 [#allocation10], 4
      %s52 = int_to_ptr.vmem [resolvable:$true] %s51
      %57 = dma.hbm_to_vmem [thread:$0]  %s3, 1024, %s52, [#allocation9], 64, 64, 4
    $region17: #{tpu_custom_call.1} parent=1 // pred_fallthru
      _
    // Predicated region
    $region18: #{tpu_custom_call.1} parent=1 // pred_check
      _
    $region19: #{tpu_custom_call.1} parent=1 // pred_check_branch
      %59 = sbr.rel (0) target = $region21
    $region20: #{tpu_custom_call.1} parent=1 // pred_region
      _
    $region21: #{tpu_custom_call.1} parent=1 // pred_fallthru
      _
    // Predicated region
    $region22: #{tpu_custom_call.1} parent=1 // pred_check
      _
    $region23: #{tpu_custom_call.1} parent=1 // pred_check_branch
      %61 = sbr.rel (0) target = $region25
    $region24: #{tpu_custom_call.1} parent=1 // pred_region
      %62 = dma.done [#allocation6], 16
    $region25: #{tpu_custom_call.1} parent=1 // pred_fallthru
      _
    // Predicated region
    $region26: #{tpu_custom_call.1} parent=1 // pred_check
      _
    $region27: #{tpu_custom_call.1} parent=1 // pred_check_branch
      %64 = sbr.rel (0) target = $region29
    $region28: #{tpu_custom_call.1} parent=1 // pred_region
      %65 = dma.done [#allocation4], 128
    $region29: #{tpu_custom_call.1} parent=1 // pred_fallthru
      _
    // Predicated region
    $region30: #{tpu_custom_call.1} parent=1 // pred_check
      _
    $region31: #{tpu_custom_call.1} parent=1 // pred_check_branch
      %67 = sbr.rel (0) target = $region33
    $region32: #{tpu_custom_call.1} parent=1 // pred_region
      %68 = dma.done [#allocation9], 128
    $region33: #{tpu_custom_call.1} parent=1 // pred_fallthru
      _
    // Predicated region
    $region34: #{tpu_custom_call.1} parent=1 // pred_check
      _
    $region35: #{tpu_custom_call.1} parent=1 // pred_check_branch
      %70 = sbr.rel (0) target = $region37
    $region36: #{tpu_custom_call.1} parent=1 // pred_region
      %71 = dma.done [#allocation9], 1024
    $region37: #{tpu_custom_call.1} parent=1 // pred_fallthru
      _
    %72 = sfence
    %p74 = scmp.eq.s32.totalorder 0, 0
    // Predicated region
    $region38: #{tpu_custom_call.1} parent=1 // pred_check
      %p75 = pneg %p74
    $region39: #{tpu_custom_call.1} parent=1 // pred_check_branch
      %77 = sbr.rel (%p75) target = $region41
    $region40: #{tpu_custom_call.1} parent=1 // pred_region
      %v78 = vld [vmem:[#allocation8] sm:$0xf]
      %v79 = vld [vmem:[#allocation8 + $0x4] sm:$0xf]
      %v80 = vunpack.c.l.bf16 %v78
      %v81 = vunpack.c.l.bf16 %v79
      %v82 = vadd.f32 %v80, 1e-07
      %v83 = vadd.f32 %v81, 1e-07
      %v84 = vsub.f32 1.0, %v80
      %v85 = vsub.f32 1.0, %v81
      %v86 = vadd.f32 %v84, 1e-07
      %v87 = vadd.f32 %v85, 1e-07
      %v88 = vrcp.pop %v86
      %v89 = vmul.f32 %v82, %v88
      %v90 = vrcp.pop %v87
      %v91 = vmul.f32 %v83, %v90
      %v92 = vlog2.pop %v89
      %v93 = vmul.f32 %v92, 0.6931472
      %v94 = vlog2.pop %v91
      %v95 = vmul.f32 %v94, 0.6931472
      %s96 = sld [smem:[#allocation3]]
      %s97 = sld [smem:[#allocation3 + $0x1]]
      %v98 = vstv %s97
      %v99 = vmul.f32 %v98, %v93
      %v100 = vmul.f32 %v98, %v95
      %v101 = vstv %s96
      %v102 = vadd.f32 %v101, %v99
      %v103 = vadd.f32 %v101, %v100
      %v104 = vsub.f32 0.0, %v102
      %v105 = vsub.f32 0.0, %v103
      %v106 = vxor.u32 %v104, 2147483648
      %v107 = vxor.u32 %v105, 2147483648
      %v108 = vmul.f32 %v106, 1.442695
      %v109 = vpow.pop %v108
      %v110 = vmul.f32 %v107, 1.442695
      %v111 = vpow.pop %v110
      %v112 = vadd.f32 %v109, 1.0
      %v113 = vadd.f32 %v111, 1.0
      %v114 = vrcp.pop %v112
      %v115 = vmul.f32 1.0, %v114
      %v116 = vrcp.pop %v113
      %v117 = vmul.f32 1.0, %v116
      %v118 = vld [vmem:[#allocation7] sm:$0xf]
      %v119 = vld [vmem:[#allocation7 + $0x4] sm:$0xf]
      %v120 = vunpack.c.l.bf16 %v118
      %v121 = vunpack.c.l.bf16 %v119
      %v122 = vmul.f32 %v120, %v115
      %v123 = vmul.f32 %v121, %v117
      %v124 = vpack.c.bf16 %v123, %v122
      %v126 = vunpack.c.l.b16 %v124
      %v127 = vunpack.c.h.b16 %v124
      %v128 = vpack.c.b16 %v126, %v126
      %v129 = vpack.c.b16 %v127, %v127
      %132 = vst [vmem:[#allocation2] sm:$0xf] %v128
      %133 = vst [vmem:[#allocation2 + $0x4] sm:$0xf] %v129
    $region41: #{tpu_custom_call.1} parent=1 // pred_fallthru
      _
    %v134 = vld [vmem:[#allocation2] sm:$0xf]
    %v135 = vld [vmem:[#allocation2 + $0x4] sm:$0xf]
    %v136 = vld [vmem:[#allocation10] sm:$0xf]
    %v137 = vld [vmem:[#allocation10 + $0x4] sm:$0xf]
    %v138 = vld [vmem:[#allocation10 + $0x8] sm:$0xf]
    %v139 = vld [vmem:[#allocation10 + $0xc] sm:$0xf]
    %v140 = vld [vmem:[#allocation10 + $0x10] sm:$0xf]
    %v141 = vld [vmem:[#allocation10 + $0x14] sm:$0xf]
    %v142 = vld [vmem:[#allocation10 + $0x18] sm:$0xf]
    %v143 = vld [vmem:[#allocation10 + $0x1c] sm:$0xf]
    %v144 = vld [vmem:[#allocation10 + $0x20] sm:$0xf]
    %v145 = vld [vmem:[#allocation10 + $0x24] sm:$0xf]
    %v146 = vld [vmem:[#allocation10 + $0x28] sm:$0xf]
    %v147 = vld [vmem:[#allocation10 + $0x2c] sm:$0xf]
    %v148 = vld [vmem:[#allocation10 + $0x30] sm:$0xf]
    %v149 = vld [vmem:[#allocation10 + $0x34] sm:$0xf]
    %v150 = vld [vmem:[#allocation10 + $0x38] sm:$0xf]
    %v151 = vld [vmem:[#allocation10 + $0x3c] sm:$0xf]
    %v152 = vld [vmem:[%s4] sm:$0x1]
    %v154 = vlaneseq
    %v155 = vshrl.u32 %v154, 7
    %v156 = vsub.s32 0, %v155
    %v157 = vrot.slane %v152, %v156
    %v161 = vunpack.c.l.b16 %v134
    %v162 = vunpack.c.l.b16 %v135
    %v163 = vpack.c.b16 %v162, %v161
    %v181 = vunpack.c.l.b16 %v136
    %v182 = vunpack.c.l.b16 %v137
    %v183 = vunpack.c.l.b16 %v138
    %v184 = vunpack.c.l.b16 %v139
    %v185 = vunpack.c.l.b16 %v140
    %v186 = vunpack.c.l.b16 %v141
    %v187 = vunpack.c.l.b16 %v142
    %v188 = vunpack.c.l.b16 %v143
    %v189 = vunpack.c.l.b16 %v144
    %v190 = vunpack.c.l.b16 %v145
    %v191 = vunpack.c.l.b16 %v146
    %v192 = vunpack.c.l.b16 %v147
    %v193 = vunpack.c.l.b16 %v148
    %v194 = vunpack.c.l.b16 %v149
    %v195 = vunpack.c.l.b16 %v150
    %v196 = vunpack.c.l.b16 %v151
    %v197 = vpack.c.b16 %v182, %v181
    %v198 = vpack.c.b16 %v184, %v183
    %v199 = vpack.c.b16 %v186, %v185
    %v200 = vpack.c.b16 %v188, %v187
    %v201 = vpack.c.b16 %v190, %v189
    %v202 = vpack.c.b16 %v192, %v191
    %v203 = vpack.c.b16 %v194, %v193
    %v204 = vpack.c.b16 %v196, %v195
    %213 = vmatprep.subr.bf16.mxu0 0
    %214 = vmatpush1.bf16.msra.mxu0 %v204
    %215 = vmatprep.subr.bf16.mxu0 0
    %216 = vmatpush1.bf16.msra.mxu0 %v203
    %217 = vmatprep.subr.bf16.mxu0 0
    %218 = vmatpush1.bf16.msra.mxu0 %v202
    %219 = vmatprep.subr.bf16.mxu0 0
    %220 = vmatpush1.bf16.msra.mxu0 %v201
    %221 = vmatprep.subr.bf16.mxu0 0
    %222 = vmatpush1.bf16.msra.mxu0 %v200
    %223 = vmatprep.subr.bf16.mxu0 0
    %224 = vmatpush1.bf16.msra.mxu0 %v199
    %225 = vmatprep.subr.bf16.mxu0 0
    %226 = vmatpush1.bf16.msra.mxu0 %v198
    %227 = vmatprep.subr.bf16.mxu0 0
    %228 = vmatpush1.bf16.msra.mxu0 %v197
    %229 = vmatprep.subr.bf16.mxu0 0
    %230 = vmatpush2.bf16.msra.mxu0 0
    %231 = vmatprep.subr.bf16.mxu0 0
    %232 = vmatpush2.bf16.msra.mxu0 0
    %233 = vmatprep.subr.bf16.mxu0 0
    %234 = vmatpush2.bf16.msra.mxu0 0
    %235 = vmatprep.subr.bf16.mxu0 0
    %236 = vmatpush2.bf16.msra.mxu0 0
    %237 = vmatprep.subr.bf16.mxu0 0
    %238 = vmatpush2.bf16.msra.mxu0 0
    %239 = vmatprep.subr.bf16.mxu0 0
    %240 = vmatpush2.bf16.msra.mxu0 0
    %241 = vmatprep.subr.bf16.mxu0 0
    %242 = vmatpush2.bf16.msra.mxu0 0
    %243 = vmatprep.subr.bf16.mxu0 0
    %244 = vmatpush2.bf16.msra.mxu0 0
    %245 = vmatprep.mubr.bf16.mxu0 0
    %246 = vmatmul.mubr.bf16.gmra.mxu0 %v163
    %v247 = vpop.f32.mrf.mxu0
    %v248 = vadd.f32 %v157, %v247
    %v249 = vpop.f32.mrf.mxu0
    %v250 = vpop.f32.mrf.mxu0
    %v251 = vadd.f32 %v157, %v250
    %v252 = vpop.f32.mrf.mxu0
    %253 = vdwg.mxu0
    %254 = vst [vmem:[#allocation11] sm:$0xff] %v248
    %255 = vst [vmem:[#allocation11 + $0x8] sm:$0xff] %v251
    // Predicated region
    $region42: #{tpu_custom_call.1} parent=1 // pred_check
      _
    $region43: #{tpu_custom_call.1} parent=1 // pred_check_branch
      %257 = sbr.rel (0) target = $region45
    $region44: #{tpu_custom_call.1} parent=1 // pred_region
      %s259 = ssub.s32 256, 256
      %260 = vsyncadd [#allocation5], %s259
      %s261 = sshll.u32 [#allocation11], 4
      %s262 = int_to_ptr.vmem [resolvable:$true] %s261
      %267 = dma.vmem_to_hbm [thread:$0]  %s262, 256, %s5, [#allocation5], 128, 128, 8
    $region45: #{tpu_custom_call.1} parent=1 // pred_fallthru
      _
    // Predicated region
    $region46: #{tpu_custom_call.1} parent=1 // pred_check
      _
    $region47: #{tpu_custom_call.1} parent=1 // pred_check_branch
      %269 = sbr.rel (0) target = $region49
    $region48: #{tpu_custom_call.1} parent=1 // pred_region
      %270 = dma.done [#allocation5], 256
    $region49: #{tpu_custom_call.1} parent=1 // pred_fallthru
      _
    %271 = vsyncpa [#allocation4], 1
    %272 = vsyncpa [#allocation9], 1
    %273 = vsyncpa [#allocation5], 1
    %274 = vsyncpa [#allocation6], 1

</llo_original>
